<compile_context>
chip_gen: v7x
topology: tpu7x:2x2x1
jax: 0.10.0
libtpu: 0.0.40
codegen_flags: <defaults>
</compile_context>

<pallas_src>
import jax
import jax.numpy as jnp
from jax.experimental import pallas as pl
from jax.experimental.pallas import tpu as pltpu


# ---------------------------------------------------------------------------
# Kernel bodies
# ---------------------------------------------------------------------------
def _attn_core(x_ref, w_ref, lens_ref, b_ref, maxlen_ref, svalid_ref):
    """Shared body: returns (norm_scores_f32 (bB,S), weighted_f32 (bB,S,H))."""
    xf = x_ref[...].astype(jnp.float32)                   # (bB, S, H)
    w = w_ref[...]                                        # (1, H) f32
    bias = b_ref[0, 0]                                    # scalar (SMEM)
    maxlen = maxlen_ref[0, 0]                             # global max(lengths)
    svalid = svalid_ref[0, 0]                             # original (unpadded) S

    # --- attention scores: Linear(H, 1) + tanh on the VPU (no MXU) ---
    raw = jnp.sum(xf * w[None, :, :], axis=-1) + bias     # (bB, S)
    scores = jnp.tanh(raw)

    # --- mask (matches PyTorch get_mask on the original S positions; any
    #     wrapper S-padding is excluded via svalid) ---
    lens = lens_ref[...]                                  # (bB, 1) int32
    pos = jax.lax.broadcasted_iota(jnp.int32, scores.shape, 1)
    keep = (((pos < lens) | (lens >= maxlen)) & (pos < svalid)).astype(jnp.float32)

    # --- fused masked softmax + renormalisation (softmax denom cancels) ---
    m = jnp.max(scores, axis=-1, keepdims=True)
    e = jnp.exp(scores - m) * keep
    s = jnp.maximum(jnp.sum(e, axis=-1, keepdims=True), 1e-30)   # guard fully-masked rows
    inv = pl.reciprocal(s, approx=True)                   # EUP approx
    inv = inv * (2.0 - s * inv)                            # one Newton step -> f32 accurate
    norm = e * inv                                         # (bB, S)

    # --- single fused f32 product reused for both weighted and rep ---
    wtd = xf * norm[:, :, None]                            # (bB, S, H) f32
    return norm, wtd


def self_attn_kernel(x_ref, w_ref, lens_ref, b_ref, maxlen_ref, svalid_ref,
                     rep_ref, scores_ref, weighted_ref):
    norm, wtd = _attn_core(x_ref, w_ref, lens_ref, b_ref, maxlen_ref, svalid_ref)
    weighted_ref[...] = wtd.astype(weighted_ref.dtype)
    rep_ref[...] = jnp.sum(wtd, axis=1).astype(rep_ref.dtype)
    scores_ref[...] = norm.astype(scores_ref.dtype)


def self_attn_kernel_noweighted(x_ref, w_ref, lens_ref, b_ref, maxlen_ref,
                                svalid_ref, rep_ref, scores_ref):
    norm, wtd = _attn_core(x_ref, w_ref, lens_ref, b_ref, maxlen_ref, svalid_ref)
    rep_ref[...] = jnp.sum(wtd, axis=1).astype(rep_ref.dtype)
    scores_ref[...] = norm.astype(scores_ref.dtype)


# ---------------------------------------------------------------------------
# Wrapper helpers
# ---------------------------------------------------------------------------
def _round_up(a, m):
    return (a + m - 1) // m * m


def _vmem_budget_bytes():
    """Generation-aware per-core VMEM budget (v5e/v6e: 128 MiB, v7x: 64 MiB)."""
    try:
        cap = int(pltpu.get_tpu_info().vmem_capacity_bytes)
    except Exception:
        cap = 64 * 1024 * 1024          # conservative (v7x per-TC) fallback
    return int(cap * 0.75)


def _pick_block_b(B, S, H, itemsize, tile_budget, write_weighted, sub):
    """Largest batch tile whose double-buffered working set fits `tile_budget`,
    while keeping >= 2 grid steps so both v7x TensorCores get work."""
    # Per batch-row resident bytes:
    #   x in (2 buffers) [+ weighted out (2 buffers)]  + ~2 f32 intermediates
    bufs = 2 + (2 if write_weighted else 0)
    row = S * H * itemsize * bufs
    row += S * H * 4 * 2                            # xf / wtd f32 intermediates
    row += (S + H) * (2 * itemsize + 2 * 4)         # small 2-D blocks / scratch
    cap = max(sub, int(tile_budget // max(row, 1)))
    cap = min(cap, 1024)                            # diminishing returns beyond this
    if B > sub:                                     # guarantee >= 2 grid steps
        cap = min(cap, max(sub, -(-B // 2)))
    blk = min(cap, max(B, sub))
    blk = max(sub, (blk // sub) * sub)
    return blk


# ---------------------------------------------------------------------------
# Public entry point
# ---------------------------------------------------------------------------
def self_attention_pallas(x, lengths, w, b, *, block_b=None,
                          return_weighted=True, interpret=False):
    """x: (B, S, H); lengths: (B,) int; w: (1, H) (PyTorch Linear layout); b: (1,)."""
    B, S, H = x.shape
    itemsize = jnp.dtype(x.dtype).itemsize

    vmem_limit = _vmem_budget_bytes()

    # --- layout padding (cheap wrapper plumbing) -------------------------
    # Lane-dense H for the dominant weighted/rep writeback, but only when the
    # byte inflation stays <= 1.5x (zero-padded columns are exact no-ops).
    Hp = H
    if H % 128 != 0 and 2 * _round_up(H, 128) <= 3 * H:
        Hp = _round_up(H, 128)
    Sp = _round_up(S, 8)                 # sublane-dense 3-D tiles

    sub = 16 if itemsize == 2 else 8     # bf16: sublane packing for 2-D outputs
    if block_b is None:
        block_b = _pick_block_b(B, Sp, Hp, itemsize, int(vmem_limit * 0.7),
                                return_weighted, sub)
    Bp = _round_up(B, block_b)
    grid = (Bp // block_b,)

    # --- operand preparation ---------------------------------------------
    x_p = x
    if (Bp, Sp, Hp) != (B, S, H):
        x_p = jnp.zeros((Bp, Sp, Hp), x.dtype).at[:B, :S, :H].set(x)
    lengths = jnp.asarray(lengths, jnp.int32)
    lens2d = jnp.zeros((Bp, 1), jnp.int32).at[:B, 0].set(lengths)
    maxlen = jnp.max(lengths).astype(jnp.int32).reshape(1, 1)     # global, as in PyTorch
    svalid = jnp.full((1, 1), S, dtype=jnp.int32)                 # true (unpadded) S
    b2d = jnp.asarray(b, dtype=jnp.float32).reshape(1, 1)
    w_f32 = jnp.asarray(w, dtype=jnp.float32).reshape(1, H)       # keep f32 end-to-end
    w_p = jnp.zeros((1, Hp), jnp.float32).at[:, :H].set(w_f32)

    # --- specs -------------------------------------------------------------
    smem = pl.BlockSpec(memory_space=pltpu.MemorySpace.SMEM)
    in_specs = [
        pl.BlockSpec((block_b, Sp, Hp), lambda i: (i, 0, 0)),   # x (batch tile)
        pl.BlockSpec((1, Hp), lambda i: (0, 0)),                # w (replicated, f32)
        pl.BlockSpec((block_b, 1), lambda i: (i, 0)),           # lengths tile
        smem,                                                   # bias scalar
        smem,                                                   # global max(lengths)
        smem,                                                   # original S (padding guard)
    ]
    out_shapes = [
        jax.ShapeDtypeStruct((Bp, Hp), x.dtype),                # representations
        jax.ShapeDtypeStruct((Bp, Sp), x.dtype),                # renormalised scores
    ]
    out_specs = [
        pl.BlockSpec((block_b, Hp), lambda i: (i, 0)),
        pl.BlockSpec((block_b, Sp), lambda i: (i, 0)),
    ]
    if return_weighted:
        kernel = self_attn_kernel
        out_shapes.append(jax.ShapeDtypeStruct((Bp, Sp, Hp), x.dtype))
        out_specs.append(pl.BlockSpec((block_b, Sp, Hp), lambda i: (i, 0, 0)))
    else:
        kernel = self_attn_kernel_noweighted

    # Advisory cost hint for XLA's scheduler (memory-bound custom call).
    io_streams = 2 if return_weighted else 1
    cost = pl.CostEstimate(
        flops=4 * Bp * Sp * Hp,
        transcendentals=2 * Bp * Sp,
        bytes_accessed=io_streams * Bp * Sp * Hp * itemsize + Bp * (Sp + Hp) * itemsize,
    )

    outs = pl.pallas_call(
        kernel,
        out_shape=tuple(out_shapes),
        grid=grid,
        in_specs=in_specs,
        out_specs=tuple(out_specs),
        compiler_params=pltpu.CompilerParams(
            dimension_semantics=("parallel",),   # v7x: shard batch tiles across both TCs
            vmem_limit_bytes=vmem_limit),
        cost_estimate=cost,
        interpret=interpret,
    )(x_p, w_p, lens2d, b2d, maxlen, svalid)

    rep = outs[0][:B, :H]
    scores = outs[1][:B, :S]
    if return_weighted:
        return rep, scores, outs[2][:B, :S, :H]
    return rep, scores


# ---------------------------------------------------------------------------
# Pure-JAX reference mirroring the PyTorch forward
# ---------------------------------------------------------------------------
def reference_jax(x, lengths, w, b):
    scores = jnp.tanh(jnp.einsum('bsh,h->bs', x, w.reshape(-1)) + jnp.reshape(b, ()))
    sm = jax.nn.softmax(scores, axis=-1)
    S = x.shape[1]
    maxlen = jnp.max(lengths)
    pos = jnp.arange(S)[None, :]
    keep = (pos < lengths[:, None]) | (lengths[:, None] >= maxlen)
    masked = sm * keep.astype(sm.dtype)
    norm = masked / jnp.sum(masked, axis=-1, keepdims=True)
    weighted = x * norm[:, :, None]
    rep = jnp.sum(weighted, axis=1)
    return rep, norm, weighted


if __name__ == "__main__":
    key = jax.random.PRNGKey(0)
    kx, kw, kb, kx2, kw2 = jax.random.split(key, 5)

    # --- test 1: natural small shapes; batch tiling -> grid=(2,) ----------
    B, S, H = 16, 8, 32          # batch, seq, attention_size
    x = jax.random.normal(kx, (B, S, H), dtype=jnp.float32)
    bound = 1.0 / (H ** 0.5)
    w = jax.random.uniform(kw, (1, H), minval=-bound, maxval=bound, dtype=jnp.float32)
    b = jax.random.uniform(kb, (1,), minval=-bound, maxval=bound, dtype=jnp.float32)
    lengths = jnp.array([8, 5, 3, 8, 1, 7, 2, 6, 4, 8, 5, 3, 7, 2, 8, 6], jnp.int32)

    rep, scores, weighted = self_attention_pallas(x, lengths, w, b)
    jax.block_until_ready((rep, scores, weighted))
    rep_r, scores_r, weighted_r = reference_jax(x, lengths, w, b)
    assert jnp.allclose(rep, rep_r, atol=1e-4, rtol=1e-4), "rep mismatch"
    assert jnp.allclose(scores, scores_r, atol=1e-4, rtol=1e-4), "scores mismatch"
    assert jnp.allclose(weighted, weighted_r, atol=1e-4, rtol=1e-4), "weighted mismatch"

    # --- test 2: exercises batch padding (B=10 -> 16), lane padding
    #     (H=100 -> 128), sublane padding (S=12 -> 16) and the slicing back --
    B2, S2, H2 = 10, 12, 100
    x2 = jax.random.normal(kx2, (B2, S2, H2), dtype=jnp.float32)
    bound2 = 1.0 / (H2 ** 0.5)
    w2 = jax.random.uniform(kw2, (1, H2), minval=-bound2, maxval=bound2, dtype=jnp.float32)
    lengths2 = jnp.array([12, 7, 3, 12, 1, 9, 5, 12, 8, 2], jnp.int32)

    rep2, scores2, weighted2 = self_attention_pallas(x2, lengths2, w2, b)
    jax.block_until_ready((rep2, scores2, weighted2))
    rep2_r, scores2_r, weighted2_r = reference_jax(x2, lengths2, w2, b)
    assert jnp.allclose(rep2, rep2_r, atol=1e-4, rtol=1e-4), "rep mismatch (padded)"
    assert jnp.allclose(scores2, scores2_r, atol=1e-4, rtol=1e-4), "scores mismatch (padded)"
    assert jnp.allclose(weighted2, weighted2_r, atol=1e-4, rtol=1e-4), "weighted mismatch (padded)"

    # --- test 3: rep/scores-only fast path (halves HBM writeback) ----------
    rep3, scores3 = self_attention_pallas(x2, lengths2, w2, b, return_weighted=False)
    jax.block_until_ready((rep3, scores3))
    assert jnp.allclose(rep3, rep2_r, atol=1e-4, rtol=1e-4), "rep mismatch (no-weighted)"
    assert jnp.allclose(scores3, scores2_r, atol=1e-4, rtol=1e-4), "scores mismatch (no-weighted)"

    print("KERNEL_OK")
</pallas_src>

<mosaic_0001>
module attributes {stable_mosaic.version = 11 : i64} {
  func.func @self_attn_kernel(%arg0: i32, %arg1: memref<8x8x32xf32, #tpu.memory_space<vmem>>, %arg2: memref<1x32xf32, #tpu.memory_space<vmem>>, %arg3: memref<8x1xi32, #tpu.memory_space<vmem>>, %arg4: memref<1x1xf32, #tpu.memory_space<smem>>, %arg5: memref<1x1xi32, #tpu.memory_space<smem>>, %arg6: memref<1x1xi32, #tpu.memory_space<smem>>, %arg7: memref<8x32xf32, #tpu.memory_space<vmem>>, %arg8: memref<8x8xf32, #tpu.memory_space<vmem>>, %arg9: memref<8x8x32xf32, #tpu.memory_space<vmem>>) attributes {dimension_semantics = [#tpu.dimension_semantics<parallel>], iteration_bounds = array<i64: 2>, scalar_prefetch = 0 : i64, scratch_operands = 0 : i64, tpu.core_type = #tpu.core_type<tc>, window_params = [{transform_indices = @transform_0, window_bounds = array<i64: 8, 8, 32>}, {pipeline_mode = #tpu.pipeline_mode<synchronous>, transform_indices = @transform_1, window_bounds = array<i64: 1, 32>}, {transform_indices = @transform_2, window_bounds = array<i64: 8, 1>}, {transform_indices = @transform_3, window_bounds = array<i64: 1, 1>}, {transform_indices = @transform_4, window_bounds = array<i64: 1, 1>}, {transform_indices = @transform_5, window_bounds = array<i64: 1, 1>}, {transform_indices = @transform_6, window_bounds = array<i64: 8, 32>}, {transform_indices = @transform_7, window_bounds = array<i64: 8, 8>}, {transform_indices = @transform_8, window_bounds = array<i64: 8, 8, 32>}]} {
    %c0 = arith.constant 0 : index
    %c0_0 = arith.constant 0 : index
    %c0_1 = arith.constant 0 : index
    %0 = vector.load %arg1[%c0, %c0_0, %c0_1] : memref<8x8x32xf32, #tpu.memory_space<vmem>>, vector<8x8x32xf32>
    %c0_2 = arith.constant 0 : index
    %c0_3 = arith.constant 0 : index
    %1 = vector.load %arg2[%c0_2, %c0_3] : memref<1x32xf32, #tpu.memory_space<vmem>>, vector<1x32xf32>
    %c0_4 = arith.constant 0 : index
    %c0_5 = arith.constant 0 : index
    %2 = memref.load %arg4[%c0_4, %c0_5] : memref<1x1xf32, #tpu.memory_space<smem>>
    %c0_6 = arith.constant 0 : index
    %c0_7 = arith.constant 0 : index
    %3 = memref.load %arg5[%c0_6, %c0_7] : memref<1x1xi32, #tpu.memory_space<smem>>
    %c0_8 = arith.constant 0 : index
    %c0_9 = arith.constant 0 : index
    %4 = memref.load %arg6[%c0_8, %c0_9] : memref<1x1xi32, #tpu.memory_space<smem>>
    %5 = vector.shape_cast %1 : vector<1x32xf32> to vector<1x1x32xf32>
    %6 = vector.broadcast %5 : vector<1x1x32xf32> to vector<8x8x32xf32>
    %7 = arith.mulf %0, %6 : vector<8x8x32xf32>
    %cst = arith.constant dense<0.000000e+00> : vector<8x8xf32>
    %8 = vector.multi_reduction <add>, %7, %cst [2] : vector<8x8x32xf32> to vector<8x8xf32>
    %9 = vector.broadcast %2 : f32 to vector<8x8xf32>
    %10 = arith.addf %8, %9 : vector<8x8xf32>
    %11 = math.tanh %10 : vector<8x8xf32>
    %c0_10 = arith.constant 0 : index
    %c0_11 = arith.constant 0 : index
    %12 = vector.load %arg3[%c0_10, %c0_11] : memref<8x1xi32, #tpu.memory_space<vmem>>, vector<8x1xi32>
    %13 = tpu.iota {dimensions = array<i32: 1>} : vector<8x8xi32>
    %14 = vector.broadcast %12 : vector<8x1xi32> to vector<8x8xi32>
    %15 = arith.cmpi slt, %13, %14 : vector<8x8xi32>
    %16 = vector.broadcast %3 : i32 to vector<8x1xi32>
    %17 = arith.cmpi sge, %12, %16 : vector<8x1xi32>
    %18 = vector.broadcast %17 : vector<8x1xi1> to vector<8x8xi1>
    %19 = arith.ori %15, %18 : vector<8x8xi1>
    %20 = vector.broadcast %4 : i32 to vector<8x8xi32>
    %21 = arith.cmpi slt, %13, %20 : vector<8x8xi32>
    %22 = arith.andi %19, %21 : vector<8x8xi1>
    %23 = arith.extui %22 : vector<8x8xi1> to vector<8x8xi32>
    %24 = arith.sitofp %23 : vector<8x8xi32> to vector<8x8xf32>
    %cst_12 = arith.constant dense<0xFF800000> : vector<8xf32>
    %25 = vector.multi_reduction <maximumf>, %11, %cst_12 [1] : vector<8x8xf32> to vector<8xf32>
    %26 = vector.shape_cast %25 : vector<8xf32> to vector<8x1xf32>
    %27 = vector.broadcast %26 : vector<8x1xf32> to vector<8x8xf32>
    %28 = arith.subf %11, %27 : vector<8x8xf32>
    %29 = math.exp %28 : vector<8x8xf32>
    %30 = arith.mulf %29, %24 : vector<8x8xf32>
    %cst_13 = arith.constant dense<0.000000e+00> : vector<8xf32>
    %31 = vector.multi_reduction <add>, %30, %cst_13 [1] : vector<8x8xf32> to vector<8xf32>
    %32 = vector.shape_cast %31 : vector<8xf32> to vector<8x1xf32>
    %cst_14 = arith.constant 1.000000e-30 : f32
    %33 = vector.broadcast %cst_14 : f32 to vector<8x1xf32>
    %34 = arith.maximumf %32, %33 : vector<8x1xf32>
    %35 = tpu.reciprocal %34 {approx = true} : vector<8x1xf32> -> vector<8x1xf32>
    %36 = arith.mulf %34, %35 : vector<8x1xf32>
    %cst_15 = arith.constant 2.000000e+00 : f32
    %37 = vector.broadcast %cst_15 : f32 to vector<8x1xf32>
    %38 = arith.subf %37, %36 : vector<8x1xf32>
    %39 = arith.mulf %35, %38 : vector<8x1xf32>
    %40 = vector.broadcast %39 : vector<8x1xf32> to vector<8x8xf32>
    %41 = arith.mulf %30, %40 : vector<8x8xf32>
    %42 = vector.shape_cast %41 : vector<8x8xf32> to vector<8x8x1xf32>
    %43 = vector.broadcast %42 : vector<8x8x1xf32> to vector<8x8x32xf32>
    %44 = arith.mulf %0, %43 : vector<8x8x32xf32>
    %c0_16 = arith.constant 0 : index
    %c0_17 = arith.constant 0 : index
    %c0_18 = arith.constant 0 : index
    %45 = vector.load %arg9[%c0_16, %c0_17, %c0_18] : memref<8x8x32xf32, #tpu.memory_space<vmem>>, vector<8x8x32xf32>
    tpu.vector_store %arg9[%c0_16, %c0_17, %c0_18], %44 {strides = array<i32>} : memref<8x8x32xf32, #tpu.memory_space<vmem>>, vector<8x8x32xf32>,
    %cst_19 = arith.constant dense<0.000000e+00> : vector<8x32xf32>
    %46 = vector.multi_reduction <add>, %44, %cst_19 [1] : vector<8x8x32xf32> to vector<8x32xf32>
    %c0_20 = arith.constant 0 : index
    %c0_21 = arith.constant 0 : index
    %47 = vector.load %arg7[%c0_20, %c0_21] : memref<8x32xf32, #tpu.memory_space<vmem>>, vector<8x32xf32>
    tpu.vector_store %arg7[%c0_20, %c0_21], %46 {strides = array<i32>} : memref<8x32xf32, #tpu.memory_space<vmem>>, vector<8x32xf32>,
    %c0_22 = arith.constant 0 : index
    %c0_23 = arith.constant 0 : index
    %48 = vector.load %arg8[%c0_22, %c0_23] : memref<8x8xf32, #tpu.memory_space<vmem>>, vector<8x8xf32>
    tpu.vector_store %arg8[%c0_22, %c0_23], %41 {strides = array<i32>} : memref<8x8xf32, #tpu.memory_space<vmem>>, vector<8x8xf32>,
    return
  }
  func.func @transform_0(%arg0: i32) -> (i32, i32, i32) {
    %c0_i32 = arith.constant 0 : i32
    %c0_i32_0 = arith.constant 0 : i32
    %c0_i32_1 = arith.constant 0 : i32
    return %arg0, %c0_i32, %c0_i32_0 : i32, i32, i32
  }
  func.func @transform_1(%arg0: i32) -> (i32, i32) {
    %c0_i32 = arith.constant 0 : i32
    %c0_i32_0 = arith.constant 0 : i32
    %c0_i32_1 = arith.constant 0 : i32
    return %c0_i32, %c0_i32_0 : i32, i32
  }
  func.func @transform_2(%arg0: i32) -> (i32, i32) {
    %c0_i32 = arith.constant 0 : i32
    %c0_i32_0 = arith.constant 0 : i32
    return %arg0, %c0_i32 : i32, i32
  }
  func.func @transform_3(%arg0: i32) -> (i32, i32) {
    %c0_i32 = arith.constant 0 : i32
    %c0_i32_0 = arith.constant 0 : i32
    %c0_i32_1 = arith.constant 0 : i32
    return %c0_i32, %c0_i32_0 : i32, i32
  }
  func.func @transform_4(%arg0: i32) -> (i32, i32) {
    %c0_i32 = arith.constant 0 : i32
    %c0_i32_0 = arith.constant 0 : i32
    %c0_i32_1 = arith.constant 0 : i32
    return %c0_i32, %c0_i32_0 : i32, i32
  }
  func.func @transform_5(%arg0: i32) -> (i32, i32) {
    %c0_i32 = arith.constant 0 : i32
    %c0_i32_0 = arith.constant 0 : i32
    %c0_i32_1 = arith.constant 0 : i32
    return %c0_i32, %c0_i32_0 : i32, i32
  }
  func.func @transform_6(%arg0: i32) -> (i32, i32) {
    %c0_i32 = arith.constant 0 : i32
    %c0_i32_0 = arith.constant 0 : i32
    return %arg0, %c0_i32 : i32, i32
  }
  func.func @transform_7(%arg0: i32) -> (i32, i32) {
    %c0_i32 = arith.constant 0 : i32
    %c0_i32_0 = arith.constant 0 : i32
    return %arg0, %c0_i32 : i32, i32
  }
  func.func @transform_8(%arg0: i32) -> (i32, i32, i32) {
    %c0_i32 = arith.constant 0 : i32
    %c0_i32_0 = arith.constant 0 : i32
    %c0_i32_1 = arith.constant 0 : i32
    return %arg0, %c0_i32, %c0_i32_0 : i32, i32, i32
  }
}

</mosaic_0001>

<llo_original>
// kernel: tpu_custom_call.1
$region0: #{tpu_custom_call.1}
  #allocation0 [shape = 'u32[]', space=smem, size = 0x4, offset = 0x4, fixed_abs, tag = 'smem constant byte address 0x4 - core index']
  #allocation1 [shape = 'u32[144,128]{1,0:T(1,128)}', space=vmem, size = 0x12000, scoped, tag = 'internal scratch']
  #allocation2 [shape = 'f32[1,1]{1,0:T(1,128)S(6)}', space=smem, size = 0x200, scoped, tag = 'scoped memory for tpu_custom_call.1']
  #allocation3 [shape = 's32[1,1]{1,0:T(1,128)S(6)}', space=smem, size = 0x200, scoped, tag = 'scoped memory for tpu_custom_call.1']
  #allocation4 [shape = 's32[1,1]{1,0:T(1,128)S(6)}', space=smem, size = 0x200, scoped, tag = 'scoped memory for tpu_custom_call.1']
  %s0 = inlined_call_operand.hbm [shape: f32[16,8,32], index: 0, kind: input, shape index: {}]
  %s1 = inlined_call_operand.vmem [shape: f32[1,32], index: 1, kind: input, shape index: {}]
  %s2 = inlined_call_operand.vmem [shape: s32[16,1], index: 2, kind: input, shape index: {}]
  %s3 = inlined_call_operand.<no memory space> [shape: f32[1,1], index: 3, kind: input, shape index: {}]
  %s4 = inlined_call_operand.<no memory space> [shape: s32[1,1], index: 4, kind: input, shape index: {}]
  %s5 = inlined_call_operand.<no memory space> [shape: s32[1,1], index: 5, kind: input, shape index: {}]
  %s6 = inlined_call_operand.hbm [shape: f32[16,32], index: 6, kind: output, shape index: {0}]
  %s7 = inlined_call_operand.vmem [shape: f32[16,8], index: 7, kind: output, shape index: {1}]
  %s8 = inlined_call_operand.hbm [shape: f32[16,8,32], index: 8, kind: output, shape index: {2}]
  %9 = xla_tuple %s6, %s7, %s8
  %s10 = sld [smem:[#allocation0]]
  $region77: #{tpu_custom_call.1} parent=0
    _
  %s12 = ssub.s32 1, %s10
  %s13 = scalar_select 0, %s12, %s10
  %14 = sst [smem:[#allocation2]] %s3
  %15 = sst [smem:[#allocation3]] %s4
  %16 = sst [smem:[#allocation4]] %s5
  $region1: #{tpu_custom_call.1} parent=0
    #allocation5 [shape = 'u8[65536]{0}', space=vmem, size = 0x10000, scoped, tag = 'input window, operand 0']
    #allocation6 [shape = 's32[2]{0}', space=sflag, size = 0x8, scoped, tag = 'scoped memory for tpu_custom_call.1']
    #allocation7 [shape = 's32[2]{0}', space=sflag, size = 0x8, scoped, tag = 'scoped memory for tpu_custom_call.1']
    #allocation8 [shape = 'u8[8192]{0}', space=vmem, size = 0x2000, scoped, tag = 'output window, operand 0']
    #allocation9 [shape = 'u8[65536]{0}', space=vmem, size = 0x10000, scoped, tag = 'output window, operand 2']
    #allocation10 [shape = 's32[2]{0}', space=sflag, size = 0x8, scoped, tag = 'scoped memory for tpu_custom_call.1']
    %17 = vsyncpa [#allocation6], 0
    %s18 = scalar_lea.sflag [#allocation6], 1
    %19 = vsyncpa %s18, 0
    %20 = vsyncpa [#allocation7], 0
    %s21 = scalar_lea.sflag [#allocation7], 1
    %22 = vsyncpa %s21, 0
    %23 = vsyncpa [#allocation10], 0
    %s24 = scalar_lea.sflag [#allocation10], 1
    %25 = vsyncpa %s24, 0
    loop: start=0, step=1, limit=4
    $region2: #{tpu_custom_call.1} parent=1 // loop_pre_header
      _
    $region3: #{tpu_custom_call.1} parent=1 // loop_header
      %s27 = sphi 0, %s31
      %p28 = scmp.ge.s32.totalorder %s27, 4
      %s37 = sphi 0, %s39
      %s40 = sphi 0, %s37
      %s41 = sphi 0, %s40
      %s57 = sphi 0, %s41
      %s61 = sphi 0, %s61
      %s63 = sphi 0, %s61
      %s64 = sphi 0, %s63
      %s78 = sphi 0, %s64
      %s84 = sphi 0, %s86
      %s87 = sphi 0, %s84
      %s88 = sphi 0, %s87
      %s104 = sphi 0, %s88
      %s108 = sphi 0, %s108
      %s110 = sphi 0, %s108
      %s111 = sphi 0, %s110
      %s125 = sphi 0, %s111
      %s129 = sphi 0, %s129
      %s131 = sphi 0, %s129
      %s132 = sphi 0, %s131
      %s146 = sphi 0, %s132
      %s150 = sphi 0, %s150
      %s152 = sphi 0, %s150
      %s153 = sphi 0, %s152
      %s167 = sphi 0, %s153
      %s173 = sphi 0, %s175
      %s176 = sphi 0, %s173
      %s177 = sphi 0, %s176
      %s193 = sphi 0, %s177
      %s199 = sphi 0, %s201
      %s202 = sphi 0, %s199
      %s203 = sphi 0, %s202
      %s219 = sphi 0, %s203
      %s225 = sphi 0, %s227
      %s228 = sphi 0, %s225
      %s229 = sphi 0, %s228
      %s245 = sphi 0, %s229
    $region4: #{tpu_custom_call.1} parent=1 // loop_header_branch
      %30 = sbr.rel (%p28) target = $region8
    $region5: #{tpu_custom_call.1} parent=1 // loop_body
      %s32 = ssub.s32 %s27, 1
      %s33 = ssub.s32 %s27, 2
      %s34 = sadd.s32 %s27, 1
      %s35 = ssub.s32 %s27, %s34
      %p36 = scmp.eq.s32.totalorder %s35, 0
      %s38 = sadd.s32 %s37, 1
      %s39 = scalar_select %p36, %s37, %s38
      %p42 = pneg %p36
      %p43 = scmp.eq.s32.totalorder %s27, 1
      %p44 = por %p42, %p43
      %p45 = scmp.ne.s32.totalorder %s37, %s40
      %p46 = scmp.eq.s32.totalorder %s27, 0
      %p47 = por %p45, %p46
      %p48 = scmp.ne.s32.totalorder %s37, %s40
      %p49 = scmp.eq.s32.totalorder %s32, 1
      %p50 = por %p48, %p49
      %p51 = scmp.ne.s32.totalorder %s40, %s41
      %p52 = scmp.eq.s32.totalorder %s32, 0
      %p53 = por %p51, %p52
      %p54 = scmp.ne.s32.totalorder %s40, %s41
      %p55 = scmp.eq.s32.totalorder %s33, 1
      %p56 = por %p54, %p55
      %p58 = scmp.ne.s32.totalorder %s41, %s57
      %p59 = scmp.eq.s32.totalorder %s33, 0
      %p60 = por %p58, %p59
      %s62 = sadd.s32 %s61, 1
      %p65 = scmp.eq.s32.totalorder %s27, 1
      %p66 = scmp.ne.s32.totalorder %s61, %s63
      %p67 = scmp.eq.s32.totalorder %s27, 0
      %p68 = por %p66, %p67
      %p69 = scmp.ne.s32.totalorder %s61, %s63
      %p70 = scmp.eq.s32.totalorder %s32, 1
      %p71 = por %p69, %p70
      %p72 = scmp.ne.s32.totalorder %s63, %s64
      %p73 = scmp.eq.s32.totalorder %s32, 0
      %p74 = por %p72, %p73
      %p75 = scmp.ne.s32.totalorder %s63, %s64
      %p76 = scmp.eq.s32.totalorder %s33, 1
      %p77 = por %p75, %p76
      %p79 = scmp.ne.s32.totalorder %s64, %s78
      %p80 = scmp.eq.s32.totalorder %s33, 0
      %p81 = por %p79, %p80
      %s82 = ssub.s32 %s27, %s34
      %p83 = scmp.eq.s32.totalorder %s82, 0
      %s85 = sadd.s32 %s84, 1
      %s86 = scalar_select %p83, %s84, %s85
      %p89 = pneg %p83
      %p90 = scmp.eq.s32.totalorder %s27, 1
      %p91 = por %p89, %p90
      %p92 = scmp.ne.s32.totalorder %s84, %s87
      %p93 = scmp.eq.s32.totalorder %s27, 0
      %p94 = por %p92, %p93
      %p95 = scmp.ne.s32.totalorder %s84, %s87
      %p96 = scmp.eq.s32.totalorder %s32, 1
      %p97 = por %p95, %p96
      %p98 = scmp.ne.s32.totalorder %s87, %s88
      %p99 = scmp.eq.s32.totalorder %s32, 0
      %p100 = por %p98, %p99
      %p101 = scmp.ne.s32.totalorder %s87, %s88
      %p102 = scmp.eq.s32.totalorder %s33, 1
      %p103 = por %p101, %p102
      %p105 = scmp.ne.s32.totalorder %s88, %s104
      %p106 = scmp.eq.s32.totalorder %s33, 0
      %p107 = por %p105, %p106
      %s109 = sadd.s32 %s108, 1
      %p112 = scmp.eq.s32.totalorder %s27, 1
      %p113 = scmp.ne.s32.totalorder %s108, %s110
      %p114 = scmp.eq.s32.totalorder %s27, 0
      %p115 = por %p113, %p114
      %p116 = scmp.ne.s32.totalorder %s108, %s110
      %p117 = scmp.eq.s32.totalorder %s32, 1
      %p118 = por %p116, %p117
      %p119 = scmp.ne.s32.totalorder %s110, %s111
      %p120 = scmp.eq.s32.totalorder %s32, 0
      %p121 = por %p119, %p120
      %p122 = scmp.ne.s32.totalorder %s110, %s111
      %p123 = scmp.eq.s32.totalorder %s33, 1
      %p124 = por %p122, %p123
      %p126 = scmp.ne.s32.totalorder %s111, %s125
      %p127 = scmp.eq.s32.totalorder %s33, 0
      %p128 = por %p126, %p127
      %s130 = sadd.s32 %s129, 1
      %p133 = scmp.eq.s32.totalorder %s27, 1
      %p134 = scmp.ne.s32.totalorder %s129, %s131
      %p135 = scmp.eq.s32.totalorder %s27, 0
      %p136 = por %p134, %p135
      %p137 = scmp.ne.s32.totalorder %s129, %s131
      %p138 = scmp.eq.s32.totalorder %s32, 1
      %p139 = por %p137, %p138
      %p140 = scmp.ne.s32.totalorder %s131, %s132
      %p141 = scmp.eq.s32.totalorder %s32, 0
      %p142 = por %p140, %p141
      %p143 = scmp.ne.s32.totalorder %s131, %s132
      %p144 = scmp.eq.s32.totalorder %s33, 1
      %p145 = por %p143, %p144
      %p147 = scmp.ne.s32.totalorder %s132, %s146
      %p148 = scmp.eq.s32.totalorder %s33, 0
      %p149 = por %p147, %p148
      %s151 = sadd.s32 %s150, 1
      %p154 = scmp.eq.s32.totalorder %s27, 1
      %p155 = scmp.ne.s32.totalorder %s150, %s152
      %p156 = scmp.eq.s32.totalorder %s27, 0
      %p157 = por %p155, %p156
      %p158 = scmp.ne.s32.totalorder %s150, %s152
      %p159 = scmp.eq.s32.totalorder %s32, 1
      %p160 = por %p158, %p159
      %p161 = scmp.ne.s32.totalorder %s152, %s153
      %p162 = scmp.eq.s32.totalorder %s32, 0
      %p163 = por %p161, %p162
      %p164 = scmp.ne.s32.totalorder %s152, %s153
      %p165 = scmp.eq.s32.totalorder %s33, 1
      %p166 = por %p164, %p165
      %p168 = scmp.ne.s32.totalorder %s153, %s167
      %p169 = scmp.eq.s32.totalorder %s33, 0
      %p170 = por %p168, %p169
      %s171 = ssub.s32 %s27, %s34
      %p172 = scmp.eq.s32.totalorder %s171, 0
      %s174 = sadd.s32 %s173, 1
      %s175 = scalar_select %p172, %s173, %s174
      %p178 = pneg %p172
      %p179 = scmp.eq.s32.totalorder %s27, 1
      %p180 = por %p178, %p179
      %p181 = scmp.ne.s32.totalorder %s173, %s176
      %p182 = scmp.eq.s32.totalorder %s27, 0
      %p183 = por %p181, %p182
      %p184 = scmp.ne.s32.totalorder %s173, %s176
      %p185 = scmp.eq.s32.totalorder %s32, 1
      %p186 = por %p184, %p185
      %p187 = scmp.ne.s32.totalorder %s176, %s177
      %p188 = scmp.eq.s32.totalorder %s32, 0
      %p189 = por %p187, %p188
      %p190 = scmp.ne.s32.totalorder %s176, %s177
      %p191 = scmp.eq.s32.totalorder %s33, 1
      %p192 = por %p190, %p191
      %p194 = scmp.ne.s32.totalorder %s177, %s193
      %p195 = scmp.eq.s32.totalorder %s33, 0
      %p196 = por %p194, %p195
      %s197 = ssub.s32 %s27, %s34
      %p198 = scmp.eq.s32.totalorder %s197, 0
      %s200 = sadd.s32 %s199, 1
      %s201 = scalar_select %p198, %s199, %s200
      %p204 = pneg %p198
      %p205 = scmp.eq.s32.totalorder %s27, 1
      %p206 = por %p204, %p205
      %p207 = scmp.ne.s32.totalorder %s199, %s202
      %p208 = scmp.eq.s32.totalorder %s27, 0
      %p209 = por %p207, %p208
      %p210 = scmp.ne.s32.totalorder %s199, %s202
      %p211 = scmp.eq.s32.totalorder %s32, 1
      %p212 = por %p210, %p211
      %p213 = scmp.ne.s32.totalorder %s202, %s203
      %p214 = scmp.eq.s32.totalorder %s32, 0
      %p215 = por %p213, %p214
      %p216 = scmp.ne.s32.totalorder %s202, %s203
      %p217 = scmp.eq.s32.totalorder %s33, 1
      %p218 = por %p216, %p217
      %p220 = scmp.ne.s32.totalorder %s203, %s219
      %p221 = scmp.eq.s32.totalorder %s33, 0
      %p222 = por %p220, %p221
      %s223 = ssub.s32 %s27, %s34
      %p224 = scmp.eq.s32.totalorder %s223, 0
      %s226 = sadd.s32 %s225, 1
      %s227 = scalar_select %p224, %s225, %s226
      %p230 = pneg %p224
      %p231 = scmp.eq.s32.totalorder %s27, 1
      %p232 = por %p230, %p231
      %p233 = scmp.ne.s32.totalorder %s225, %s228
      %p234 = scmp.eq.s32.totalorder %s27, 0
      %p235 = por %p233, %p234
      %p236 = scmp.ne.s32.totalorder %s225, %s228
      %p237 = scmp.eq.s32.totalorder %s32, 1
      %p238 = por %p236, %p237
      %p239 = scmp.ne.s32.totalorder %s228, %s229
      %p240 = scmp.eq.s32.totalorder %s32, 0
      %p241 = por %p239, %p240
      %p242 = scmp.ne.s32.totalorder %s228, %s229
      %p243 = scmp.eq.s32.totalorder %s33, 1
      %p244 = por %p242, %p243
      %p246 = scmp.ne.s32.totalorder %s229, %s245
      %p247 = scmp.eq.s32.totalorder %s33, 0
      %p248 = por %p246, %p247
      %p249 = scmp.le.s32.totalorder 1, %s27
      %p250 = scmp.lt.s32.totalorder %s27, 3
      %p251 = pnand %p249, %p250
      %p252 = pneg %p251
      // Predicated region
      $region9: #{tpu_custom_call.1} parent=5 // pred_check
        _
      $region10: #{tpu_custom_call.1} parent=5 // pred_check_branch
        %254 = sbr.rel (%p251) target = $region12
      $region11: #{tpu_custom_call.1} parent=5 // pred_region
        %s255 = ssub.s32 %s27, 1
        // Predicated region
        $region13: #{tpu_custom_call.1} parent=11 // pred_check
          %p256 = pneg %p74
        $region14: #{tpu_custom_call.1} parent=11 // pred_check_branch
          %258 = sbr.rel (%p256) target = $region16
        $region15: #{tpu_custom_call.1} parent=11 // pred_region
          _
        $region16: #{tpu_custom_call.1} parent=11 // pred_fallthru
          _
        // Predicated region
        $region17: #{tpu_custom_call.1} parent=11 // pred_check
          %p259 = pneg %p121
        $region18: #{tpu_custom_call.1} parent=11 // pred_check_branch
          %261 = sbr.rel (%p259) target = $region20
        $region19: #{tpu_custom_call.1} parent=11 // pred_region
          _
        $region20: #{tpu_custom_call.1} parent=11 // pred_fallthru
          _
        // Predicated region
        $region21: #{tpu_custom_call.1} parent=11 // pred_check
          %p262 = pneg %p142
        $region22: #{tpu_custom_call.1} parent=11 // pred_check_branch
          %264 = sbr.rel (%p262) target = $region24
        $region23: #{tpu_custom_call.1} parent=11 // pred_region
          _
        $region24: #{tpu_custom_call.1} parent=11 // pred_fallthru
          _
        // Predicated region
        $region25: #{tpu_custom_call.1} parent=11 // pred_check
          %p265 = pneg %p163
        $region26: #{tpu_custom_call.1} parent=11 // pred_check_branch
          %267 = sbr.rel (%p265) target = $region28
        $region27: #{tpu_custom_call.1} parent=11 // pred_region
          _
        $region28: #{tpu_custom_call.1} parent=11 // pred_fallthru
          _
      $region12: #{tpu_custom_call.1} parent=5 // pred_fallthru
        _
      %p268 = scmp.lt.s32.totalorder %s27, 2
      // Predicated region
      $region29: #{tpu_custom_call.1} parent=5 // pred_check
        %p269 = pneg %p268
      $region30: #{tpu_custom_call.1} parent=5 // pred_check_branch
        %271 = sbr.rel (%p269) target = $region32
      $region31: #{tpu_custom_call.1} parent=5 // pred_region
        // Predicated region
        $region33: #{tpu_custom_call.1} parent=31 // pred_check
          %p272 = pneg %p47
        $region34: #{tpu_custom_call.1} parent=31 // pred_check_branch
          %274 = sbr.rel (%p272) target = $region36
        $region35: #{tpu_custom_call.1} parent=31 // pred_region
          %s275 = sand.u32 %s37, 1
          %s276 = scalar_lea.sflag [#allocation6], %s275
          %s277 = sand.u32 %s37, 1
          %s278 = smul.addr %s277, 64
          %s279 = scalar_lea.vmem [#allocation5], %s278
          %s280 = smul.u32 8, %s27
          %s282 = ssub.s32 1024, 1024
          %283 = vsyncadd %s276, %s282
          %s284 = smul.addr %s280, 128
          %s285 = scalar_lea.hbm %s0, %s284
          %s286 = sshll.u32 %s279, 4
          %s287 = int_to_ptr.vmem [resolvable:$true] %s286
          %292 = dma.hbm_to_vmem [thread:$0]  %s285, 1024, %s287, %s276, 128, 128, 8
        $region36: #{tpu_custom_call.1} parent=31 // pred_fallthru
          _
        // Predicated region
        $region37: #{tpu_custom_call.1} parent=31 // pred_check
          %p293 = pneg %p94
        $region38: #{tpu_custom_call.1} parent=31 // pred_check_branch
          %295 = sbr.rel (%p293) target = $region40
        $region39: #{tpu_custom_call.1} parent=31 // pred_region
          %p296 = scmp.lt.s32.totalorder %s27, 1
          %s297 = scalar_select %p296, %s27, 1
          %s298 = smul.addr %s297, 8
          %s299 = scalar_lea.vmem %s2, %s298
        $region40: #{tpu_custom_call.1} parent=31 // pred_fallthru
          _
      $region32: #{tpu_custom_call.1} parent=5 // pred_fallthru
        _
      %p300 = scmp.le.s32.totalorder 1, %s27
      %p301 = scmp.lt.s32.totalorder %s27, 3
      %p302 = pnand %p300, %p301
      %p303 = pneg %p302
      // Predicated region
      $region41: #{tpu_custom_call.1} parent=5 // pred_check
        _
      $region42: #{tpu_custom_call.1} parent=5 // pred_check_branch
        %305 = sbr.rel (%p302) target = $region44
      $region43: #{tpu_custom_call.1} parent=5 // pred_region
        %s306 = ssub.s32 %s27, 1
        %s307 = sand.u32 %s40, 1
        %s308 = scalar_lea.sflag [#allocation6], %s307
        %s309 = sand.u32 %s40, 1
        %s310 = smul.addr %s309, 64
        %s311 = scalar_lea.vmem [#allocation5], %s310
        // Predicated region
        $region45: #{tpu_custom_call.1} parent=43 // pred_check
          %p312 = pneg %p53
        $region46: #{tpu_custom_call.1} parent=43 // pred_check_branch
          %314 = sbr.rel (%p312) target = $region48
        $region47: #{tpu_custom_call.1} parent=43 // pred_region
          %315 = dma.done %s308, 1024
        $region48: #{tpu_custom_call.1} parent=43 // pred_fallthru
          _
        %s316 = sand.u32 %s40, 1
        %s317 = scalar_lea.sflag [#allocation6], %s316
        %s318 = sand.u32 %s40, 1
        %s319 = smul.addr %s318, 64
        %s320 = scalar_lea.vmem [#allocation5], %s319
        %p321 = pneg %p53
        %p322 = pneg %p50
        %p323 = pneg %p74
        %p324 = pneg %p71
        %p325 = scmp.lt.s32.totalorder %s32, 1
        %s326 = scalar_select %p325, %s32, 1
        %s327 = smul.addr %s326, 8
        %s328 = scalar_lea.vmem %s2, %s327
        %p329 = pneg %p100
        %p330 = pneg %p97
        %p331 = pneg %p121
        %p332 = pneg %p118
        %p333 = pneg %p142
        %p334 = pneg %p139
        %p335 = pneg %p163
        %p336 = pneg %p160
        %p337 = pneg %p189
        %p338 = pneg %p186
        %s339 = sand.u32 %s176, 1
        %s340 = scalar_lea.sflag [#allocation7], %s339
        %s341 = sand.u32 %s176, 1
        %s342 = smul.addr %s341, 8
        %s343 = scalar_lea.vmem [#allocation8], %s342
        %p344 = pneg %p215
        %p345 = pneg %p212
        %p346 = scmp.lt.s32.totalorder %s32, 1
        %s347 = scalar_select %p346, %s32, 1
        %s348 = smul.addr %s347, 8
        %s349 = scalar_lea.vmem %s7, %s348
        %p350 = pneg %p241
        %p351 = pneg %p238
        %s352 = sand.u32 %s228, 1
        %s353 = scalar_lea.sflag [#allocation10], %s352
        %s354 = sand.u32 %s228, 1
        %s355 = smul.addr %s354, 64
        %s356 = scalar_lea.vmem [#allocation9], %s355
        %s357 = smul.u32 8, %s32
        %p358 = scmp.lt.s32.totalorder %s32, 1
        %s359 = scalar_select %p358, %s32, 1
        %s360 = smul.addr %s359, 8
        %s361 = scalar_lea.vmem %s2, %s360
        %p362 = scmp.lt.s32.totalorder %s32, 1
        %s363 = scalar_select %p362, %s32, 1
        %s364 = smul.addr %s363, 8
        %s365 = scalar_lea.vmem %s7, %s364
        %s366 = smul.u32 8, %s32
        %v367 = vld [vmem:[%s311] sm:$0xff]
        %v368 = vld [vmem:[%s311 + $0x8] sm:$0xff]
        %v369 = vld [vmem:[%s311 + $0x10] sm:$0xff]
        %v370 = vld [vmem:[%s311 + $0x18] sm:$0xff]
        %v371 = vld [vmem:[%s311 + $0x20] sm:$0xff]
        %v372 = vld [vmem:[%s311 + $0x28] sm:$0xff]
        %v373 = vld [vmem:[%s311 + $0x30] sm:$0xff]
        %v374 = vld [vmem:[%s311 + $0x38] sm:$0xff]
        %v375 = vld [vmem:[%s1] sm:$0x1]
        %s376 = sld [smem:[#allocation2]]
        %s377 = sld [smem:[#allocation3]]
        %s378 = sld [smem:[#allocation4]]
        %v380 = vlaneseq
        %v381 = vshrl.u32 %v380, 7
        %v382 = vsub.s32 0, %v381
        %v383 = vrot.slane %v375, %v382
        %v385 = vmul.f32 %v367, %v383
        %v386 = vmul.f32 %v368, %v383
        %v387 = vmul.f32 %v369, %v383
        %v388 = vmul.f32 %v370, %v383
        %v389 = vmul.f32 %v371, %v383
        %v390 = vmul.f32 %v372, %v383
        %v391 = vmul.f32 %v373, %v383
        %v392 = vmul.f32 %v374, %v383
        %vm393 = vcmask 261120
        %v394 = vsel %vm393, %v385, 0.0
        %395 = vadd.xlane.f32.xlu0 %v394
        %v396 = vpop.xlane.xlu0 %395
        %v397 = vsel %vm393, %v386, 0.0
        %398 = vadd.xlane.f32.xlu0 %v397
        %v399 = vpop.xlane.xlu0 %398
        %v400 = vsel %vm393, %v387, 0.0
        %401 = vadd.xlane.f32.xlu0 %v400
        %v402 = vpop.xlane.xlu0 %401
        %v403 = vsel %vm393, %v388, 0.0
        %404 = vadd.xlane.f32.xlu0 %v403
        %v405 = vpop.xlane.xlu0 %404
        %v406 = vsel %vm393, %v389, 0.0
        %407 = vadd.xlane.f32.xlu0 %v406
        %v408 = vpop.xlane.xlu0 %407
        %v409 = vsel %vm393, %v390, 0.0
        %410 = vadd.xlane.f32.xlu0 %v409
        %v411 = vpop.xlane.xlu0 %410
        %v412 = vsel %vm393, %v391, 0.0
        %413 = vadd.xlane.f32.xlu0 %v412
        %v414 = vpop.xlane.xlu0 %413
        %v415 = vsel %vm393, %v392, 0.0
        %416 = vadd.xlane.f32.xlu0 %v415
        %v417 = vpop.xlane.xlu0 %416
        %v418 = vstv %s376
        %v419 = vadd.f32 %v396, %v418
        %v420 = vadd.f32 %v399, %v418
        %v421 = vadd.f32 %v402, %v418
        %v422 = vadd.f32 %v405, %v418
        %v423 = vadd.f32 %v408, %v418
        %v424 = vadd.f32 %v411, %v418
        %v425 = vadd.f32 %v414, %v418
        %v426 = vadd.f32 %v417, %v418
        %v427 = vtanh.pop %v419
        %v428 = vtanh.pop %v420
        %v429 = vtanh.pop %v421
        %v430 = vtanh.pop %v422
        %v431 = vtanh.pop %v423
        %v432 = vtanh.pop %v424
        %v433 = vtanh.pop %v425
        %v434 = vtanh.pop %v426
        %v435 = vld [vmem:[%s361] sm:$0xff]
        %v436 = vlaneseq
        %v437 = vand.u32 %v436, 127
        %438 = vset.pattern.permute.xlu0 0
        %439 = vperm.xlu0 %438, %v435
        %v440 = vpop.permute.xlu0 %439
        %vm441 = vcmp.lt.s32.totalorder %v437, %v440
        %v442 = vstv %s377
        %vm443 = vcmp.ge.s32.totalorder %v435, %v442
        %v444 = vsel %vm443, 1, 0
        %445 = vset.pattern.permute.xlu0 0
        %446 = vperm.xlu0 %445, %v444
        %v447 = vpop.permute.xlu0 %446
        %vm448 = vcmp.eq.s32.totalorder %v447, 1
        %vm449 = vmor %vm441, %vm448
        %v450 = vstv %s378
        %vm451 = vcmp.lt.s32.totalorder %v437, %v450
        %vm452 = vmand %vm449, %vm451
        %v453 = vsel %vm452, 1, 0
        %v454 = vcvt.s32.f32 %v453
        %v463 = vlaneseq
        %v464 = vshrl.u32 %v463, 7
        %v465 = vsub.s32 %v437, %v464
        %v466 = vrot.slane %v427, %v465
        %v467 = vlaneseq
        %v468 = vshrl.u32 %v467, 7
        %v469 = vsub.s32 %v437, %v468
        %v470 = vrot.slane %v428, %v469
        %v471 = vlaneseq
        %v472 = vshrl.u32 %v471, 7
        %v473 = vsub.s32 %v437, %v472
        %v474 = vrot.slane %v429, %v473
        %v475 = vlaneseq
        %v476 = vshrl.u32 %v475, 7
        %v477 = vsub.s32 %v437, %v476
        %v478 = vrot.slane %v430, %v477
        %v479 = vlaneseq
        %v480 = vshrl.u32 %v479, 7
        %v481 = vsub.s32 %v437, %v480
        %v482 = vrot.slane %v431, %v481
        %v483 = vlaneseq
        %v484 = vshrl.u32 %v483, 7
        %v485 = vsub.s32 %v437, %v484
        %v486 = vrot.slane %v432, %v485
        %v487 = vlaneseq
        %v488 = vshrl.u32 %v487, 7
        %v489 = vsub.s32 %v437, %v488
        %v490 = vrot.slane %v433, %v489
        %v491 = vlaneseq
        %v492 = vshrl.u32 %v491, 7
        %v493 = vsub.s32 %v437, %v492
        %v494 = vrot.slane %v434, %v493
        %vm495 = vcmask 1041409
        %v496 = vsel %vm495, %v470, %v466
        %vm497 = vcmask 1042434
        %v498 = vsel %vm497, %v474, %v496
        %vm499 = vcmask 1043459
        %v500 = vsel %vm499, %v478, %v498
        %vm501 = vcmask 1044484
        %v502 = vsel %vm501, %v482, %v500
        %vm503 = vcmask 1045509
        %v504 = vsel %vm503, %v486, %v502
        %vm505 = vcmask 1046534
        %v506 = vsel %vm505, %v490, %v504
        %vm507 = vcmask 1047559
        %v508 = vsel %vm507, %v494, %v506
        %vm510 = vcmask 64512
        %v511 = vsel %vm510, %v508, -inf
        %512 = vmax.xlane.f32.xlu0 %v511
        %v513 = vpop.xlane.xlu0 %512
        %v515 = vlaneseq
        %v516 = vshrl.u32 %v515, 7
        %v517 = vsub.s32 0, %v516
        %v518 = vrot.slane %v513, %v517
        %v519 = vlaneseq
        %v520 = vshrl.u32 %v519, 7
        %v521 = vsub.s32 1, %v520
        %v522 = vrot.slane %v513, %v521
        %v523 = vlaneseq
        %v524 = vshrl.u32 %v523, 7
        %v525 = vsub.s32 2, %v524
        %v526 = vrot.slane %v513, %v525
        %v527 = vlaneseq
        %v528 = vshrl.u32 %v527, 7
        %v529 = vsub.s32 3, %v528
        %v530 = vrot.slane %v513, %v529
        %v531 = vlaneseq
        %v532 = vshrl.u32 %v531, 7
        %v533 = vsub.s32 4, %v532
        %v534 = vrot.slane %v513, %v533
        %v535 = vlaneseq
        %v536 = vshrl.u32 %v535, 7
        %v537 = vsub.s32 5, %v536
        %v538 = vrot.slane %v513, %v537
        %v539 = vlaneseq
        %v540 = vshrl.u32 %v539, 7
        %v541 = vsub.s32 6, %v540
        %v542 = vrot.slane %v513, %v541
        %v543 = vlaneseq
        %v544 = vshrl.u32 %v543, 7
        %v545 = vsub.s32 7, %v544
        %v546 = vrot.slane %v513, %v545
        %v555 = vsub.f32 %v427, %v518
        %v556 = vsub.f32 %v428, %v522
        %v557 = vsub.f32 %v429, %v526
        %v558 = vsub.f32 %v430, %v530
        %v559 = vsub.f32 %v431, %v534
        %v560 = vsub.f32 %v432, %v538
        %v561 = vsub.f32 %v433, %v542
        %v562 = vsub.f32 %v434, %v546
        %v563 = vmul.f32 %v555, 1.442695
        %v564 = vpow.pop %v563
        %v565 = vmul.f32 %v556, 1.442695
        %v566 = vpow.pop %v565
        %v567 = vmul.f32 %v557, 1.442695
        %v568 = vpow.pop %v567
        %v569 = vmul.f32 %v558, 1.442695
        %v570 = vpow.pop %v569
        %v571 = vmul.f32 %v559, 1.442695
        %v572 = vpow.pop %v571
        %v573 = vmul.f32 %v560, 1.442695
        %v574 = vpow.pop %v573
        %v575 = vmul.f32 %v561, 1.442695
        %v576 = vpow.pop %v575
        %v577 = vmul.f32 %v562, 1.442695
        %v578 = vpow.pop %v577
        %v580 = vlaneseq
        %v581 = vshrl.u32 %v580, 7
        %v582 = vsub.s32 0, %v581
        %v583 = vrot.slane %v454, %v582
        %585 = vbcast.lane.b32.xlu0 %v583, 256
        %v586 = vpop.permute.xlu0 %585
        %v587 = vlaneseq
        %v588 = vshrl.u32 %v587, 7
        %v589 = vsub.s32 1, %v588
        %v590 = vrot.slane %v454, %v589
        %592 = vbcast.lane.b32.xlu0 %v590, 256
        %v593 = vpop.permute.xlu0 %592
        %v594 = vlaneseq
        %v595 = vshrl.u32 %v594, 7
        %v596 = vsub.s32 2, %v595
        %v597 = vrot.slane %v454, %v596
        %599 = vbcast.lane.b32.xlu0 %v597, 256
        %v600 = vpop.permute.xlu0 %599
        %v601 = vlaneseq
        %v602 = vshrl.u32 %v601, 7
        %v603 = vsub.s32 3, %v602
        %v604 = vrot.slane %v454, %v603
        %606 = vbcast.lane.b32.xlu0 %v604, 256
        %v607 = vpop.permute.xlu0 %606
        %v608 = vlaneseq
        %v609 = vshrl.u32 %v608, 7
        %v610 = vsub.s32 4, %v609
        %v611 = vrot.slane %v454, %v610
        %613 = vbcast.lane.b32.xlu0 %v611, 256
        %v614 = vpop.permute.xlu0 %613
        %v615 = vlaneseq
        %v616 = vshrl.u32 %v615, 7
        %v617 = vsub.s32 5, %v616
        %v618 = vrot.slane %v454, %v617
        %620 = vbcast.lane.b32.xlu0 %v618, 256
        %v621 = vpop.permute.xlu0 %620
        %v622 = vlaneseq
        %v623 = vshrl.u32 %v622, 7
        %v624 = vsub.s32 6, %v623
        %v625 = vrot.slane %v454, %v624
        %627 = vbcast.lane.b32.xlu0 %v625, 256
        %v628 = vpop.permute.xlu0 %627
        %v629 = vlaneseq
        %v630 = vshrl.u32 %v629, 7
        %v631 = vsub.s32 7, %v630
        %v632 = vrot.slane %v454, %v631
        %634 = vbcast.lane.b32.xlu0 %v632, 256
        %v635 = vpop.permute.xlu0 %634
        %v644 = vmul.f32 %v564, %v586
        %v645 = vmul.f32 %v566, %v593
        %v646 = vmul.f32 %v568, %v600
        %v647 = vmul.f32 %v570, %v607
        %v648 = vmul.f32 %v572, %v614
        %v649 = vmul.f32 %v574, %v621
        %v650 = vmul.f32 %v576, %v628
        %v651 = vmul.f32 %v578, %v635
        %660 = vset.pattern.permute.xlu0 0
        %661 = vperm.xlu0 %660, %v644
        %v662 = vpop.permute.xlu0 %661
        %663 = vset.pattern.permute.xlu0 0
        %664 = vperm.xlu0 %663, %v645
        %v665 = vpop.permute.xlu0 %664
        %666 = vset.pattern.permute.xlu0 0
        %667 = vperm.xlu0 %666, %v646
        %v668 = vpop.permute.xlu0 %667
        %669 = vset.pattern.permute.xlu0 0
        %670 = vperm.xlu0 %669, %v647
        %v671 = vpop.permute.xlu0 %670
        %672 = vset.pattern.permute.xlu0 0
        %673 = vperm.xlu0 %672, %v648
        %v674 = vpop.permute.xlu0 %673
        %675 = vset.pattern.permute.xlu0 0
        %676 = vperm.xlu0 %675, %v649
        %v677 = vpop.permute.xlu0 %676
        %678 = vset.pattern.permute.xlu0 0
        %679 = vperm.xlu0 %678, %v650
        %v680 = vpop.permute.xlu0 %679
        %681 = vset.pattern.permute.xlu0 0
        %682 = vperm.xlu0 %681, %v651
        %v683 = vpop.permute.xlu0 %682
        %v684 = vlaneseq
        %v685 = vshrl.u32 %v684, 7
        %v686 = vsub.s32 %v437, %v685
        %v687 = vrot.slane %v662, %v686
        %v688 = vlaneseq
        %v689 = vshrl.u32 %v688, 7
        %v690 = vsub.s32 %v437, %v689
        %v691 = vrot.slane %v665, %v690
        %v692 = vlaneseq
        %v693 = vshrl.u32 %v692, 7
        %v694 = vsub.s32 %v437, %v693
        %v695 = vrot.slane %v668, %v694
        %v696 = vlaneseq
        %v697 = vshrl.u32 %v696, 7
        %v698 = vsub.s32 %v437, %v697
        %v699 = vrot.slane %v671, %v698
        %v700 = vlaneseq
        %v701 = vshrl.u32 %v700, 7
        %v702 = vsub.s32 %v437, %v701
        %v703 = vrot.slane %v674, %v702
        %v704 = vlaneseq
        %v705 = vshrl.u32 %v704, 7
        %v706 = vsub.s32 %v437, %v705
        %v707 = vrot.slane %v677, %v706
        %v708 = vlaneseq
        %v709 = vshrl.u32 %v708, 7
        %v710 = vsub.s32 %v437, %v709
        %v711 = vrot.slane %v680, %v710
        %v712 = vlaneseq
        %v713 = vshrl.u32 %v712, 7
        %v714 = vsub.s32 %v437, %v713
        %v715 = vrot.slane %v683, %v714
        %v716 = vsel %vm495, %v691, %v687
        %v717 = vsel %vm497, %v695, %v716
        %v718 = vsel %vm499, %v699, %v717
        %v719 = vsel %vm501, %v703, %v718
        %v720 = vsel %vm503, %v707, %v719
        %v721 = vsel %vm505, %v711, %v720
        %v722 = vsel %vm507, %v715, %v721
        %v724 = vsel %vm510, %v722, 0.0
        %725 = vadd.xlane.f32.xlu0 %v724
        %v726 = vpop.xlane.xlu0 %725
        %v727 = vmax.f32 %v726, 1e-30
        %v728 = vrcp.pop %v727
        %v729 = vmul.f32 %v727, %v728
        %v730 = vsub.f32 2.0, %v729
        %v731 = vmul.f32 %v728, %v730
        %v733 = vlaneseq
        %v734 = vshrl.u32 %v733, 7
        %v735 = vsub.s32 0, %v734
        %v736 = vrot.slane %v731, %v735
        %v737 = vlaneseq
        %v738 = vshrl.u32 %v737, 7
        %v739 = vsub.s32 1, %v738
        %v740 = vrot.slane %v731, %v739
        %v741 = vlaneseq
        %v742 = vshrl.u32 %v741, 7
        %v743 = vsub.s32 2, %v742
        %v744 = vrot.slane %v731, %v743
        %v745 = vlaneseq
        %v746 = vshrl.u32 %v745, 7
        %v747 = vsub.s32 3, %v746
        %v748 = vrot.slane %v731, %v747
        %v749 = vlaneseq
        %v750 = vshrl.u32 %v749, 7
        %v751 = vsub.s32 4, %v750
        %v752 = vrot.slane %v731, %v751
        %v753 = vlaneseq
        %v754 = vshrl.u32 %v753, 7
        %v755 = vsub.s32 5, %v754
        %v756 = vrot.slane %v731, %v755
        %v757 = vlaneseq
        %v758 = vshrl.u32 %v757, 7
        %v759 = vsub.s32 6, %v758
        %v760 = vrot.slane %v731, %v759
        %v761 = vlaneseq
        %v762 = vshrl.u32 %v761, 7
        %v763 = vsub.s32 7, %v762
        %v764 = vrot.slane %v731, %v763
        %v773 = vmul.f32 %v644, %v736
        %v774 = vmul.f32 %v645, %v740
        %v775 = vmul.f32 %v646, %v744
        %v776 = vmul.f32 %v647, %v748
        %v777 = vmul.f32 %v648, %v752
        %v778 = vmul.f32 %v649, %v756
        %v779 = vmul.f32 %v650, %v760
        %v780 = vmul.f32 %v651, %v764
        %782 = vset.pattern.permute.xlu0 0
        %783 = vperm.xlu0 %782, %v773
        %v784 = vpop.permute.xlu0 %783
        %787 = vset.pattern.permute.xlu0 0
        %788 = vperm.xlu0 %787, %v774
        %v789 = vpop.permute.xlu0 %788
        %792 = vset.pattern.permute.xlu0 0
        %793 = vperm.xlu0 %792, %v775
        %v794 = vpop.permute.xlu0 %793
        %797 = vset.pattern.permute.xlu0 0
        %798 = vperm.xlu0 %797, %v776
        %v799 = vpop.permute.xlu0 %798
        %802 = vset.pattern.permute.xlu0 0
        %803 = vperm.xlu0 %802, %v777
        %v804 = vpop.permute.xlu0 %803
        %807 = vset.pattern.permute.xlu0 0
        %808 = vperm.xlu0 %807, %v778
        %v809 = vpop.permute.xlu0 %808
        %812 = vset.pattern.permute.xlu0 0
        %813 = vperm.xlu0 %812, %v779
        %v814 = vpop.permute.xlu0 %813
        %817 = vset.pattern.permute.xlu0 0
        %818 = vperm.xlu0 %817, %v780
        %v819 = vpop.permute.xlu0 %818
        %v821 = vmul.f32 %v367, %v784
        %v822 = vmul.f32 %v368, %v789
        %v823 = vmul.f32 %v369, %v794
        %v824 = vmul.f32 %v370, %v799
        %v825 = vmul.f32 %v371, %v804
        %v826 = vmul.f32 %v372, %v809
        %v827 = vmul.f32 %v373, %v814
        %v828 = vmul.f32 %v374, %v819
        %829 = vst.msk [vmem:[%s356] sm:$0xff] %vm393, %v821
        %830 = vst.msk [vmem:[%s356 + $0x8] sm:$0xff] %vm393, %v822
        %831 = vst.msk [vmem:[%s356 + $0x10] sm:$0xff] %vm393, %v823
        %832 = vst.msk [vmem:[%s356 + $0x18] sm:$0xff] %vm393, %v824
        %833 = vst.msk [vmem:[%s356 + $0x20] sm:$0xff] %vm393, %v825
        %834 = vst.msk [vmem:[%s356 + $0x28] sm:$0xff] %vm393, %v826
        %835 = vst.msk [vmem:[%s356 + $0x30] sm:$0xff] %vm393, %v827
        %836 = vst.msk [vmem:[%s356 + $0x38] sm:$0xff] %vm393, %v828
        %v837 = vsel %vm393, %v821, 0.0
        %v838 = vrot.slane %v837, 4
        %v839 = vadd.f32 %v837, %v838
        %v840 = vrot.slane %v839, 2
        %v841 = vadd.f32 %v839, %v840
        %v842 = vrot.slane %v841, 1
        %v843 = vadd.f32 %v841, %v842
        %v844 = vsel %vm393, %v822, 0.0
        %v845 = vrot.slane %v844, 4
        %v846 = vadd.f32 %v844, %v845
        %v847 = vrot.slane %v846, 2
        %v848 = vadd.f32 %v846, %v847
        %v849 = vrot.slane %v848, 1
        %v850 = vadd.f32 %v848, %v849
        %v851 = vsel %vm393, %v823, 0.0
        %v852 = vrot.slane %v851, 4
        %v853 = vadd.f32 %v851, %v852
        %v854 = vrot.slane %v853, 2
        %v855 = vadd.f32 %v853, %v854
        %v856 = vrot.slane %v855, 1
        %v857 = vadd.f32 %v855, %v856
        %v858 = vsel %vm393, %v824, 0.0
        %v859 = vrot.slane %v858, 4
        %v860 = vadd.f32 %v858, %v859
        %v861 = vrot.slane %v860, 2
        %v862 = vadd.f32 %v860, %v861
        %v863 = vrot.slane %v862, 1
        %v864 = vadd.f32 %v862, %v863
        %v865 = vsel %vm393, %v825, 0.0
        %v866 = vrot.slane %v865, 4
        %v867 = vadd.f32 %v865, %v866
        %v868 = vrot.slane %v867, 2
        %v869 = vadd.f32 %v867, %v868
        %v870 = vrot.slane %v869, 1
        %v871 = vadd.f32 %v869, %v870
        %v872 = vsel %vm393, %v826, 0.0
        %v873 = vrot.slane %v872, 4
        %v874 = vadd.f32 %v872, %v873
        %v875 = vrot.slane %v874, 2
        %v876 = vadd.f32 %v874, %v875
        %v877 = vrot.slane %v876, 1
        %v878 = vadd.f32 %v876, %v877
        %v879 = vsel %vm393, %v827, 0.0
        %v880 = vrot.slane %v879, 4
        %v881 = vadd.f32 %v879, %v880
        %v882 = vrot.slane %v881, 2
        %v883 = vadd.f32 %v881, %v882
        %v884 = vrot.slane %v883, 1
        %v885 = vadd.f32 %v883, %v884
        %v886 = vsel %vm393, %v828, 0.0
        %v887 = vrot.slane %v886, 4
        %v888 = vadd.f32 %v886, %v887
        %v889 = vrot.slane %v888, 2
        %v890 = vadd.f32 %v888, %v889
        %v891 = vrot.slane %v890, 1
        %v892 = vadd.f32 %v890, %v891
        %v901 = vsel %vm495, %v850, %v843
        %v902 = vsel %vm497, %v857, %v901
        %v903 = vsel %vm499, %v864, %v902
        %v904 = vsel %vm501, %v871, %v903
        %v905 = vsel %vm503, %v878, %v904
        %v906 = vsel %vm505, %v885, %v905
        %v907 = vsel %vm507, %v892, %v906
        %909 = vst.msk [vmem:[%s343] sm:$0xff] %vm393, %v907
        %v910 = vlaneseq
        %v911 = vshrl.u32 %v910, 7
        %v912 = vsub.s32 %v437, %v911
        %v913 = vrot.slane %v784, %v912
        %v914 = vlaneseq
        %v915 = vshrl.u32 %v914, 7
        %v916 = vsub.s32 %v437, %v915
        %v917 = vrot.slane %v789, %v916
        %v918 = vlaneseq
        %v919 = vshrl.u32 %v918, 7
        %v920 = vsub.s32 %v437, %v919
        %v921 = vrot.slane %v794, %v920
        %v922 = vlaneseq
        %v923 = vshrl.u32 %v922, 7
        %v924 = vsub.s32 %v437, %v923
        %v925 = vrot.slane %v799, %v924
        %v926 = vlaneseq
        %v927 = vshrl.u32 %v926, 7
        %v928 = vsub.s32 %v437, %v927
        %v929 = vrot.slane %v804, %v928
        %v930 = vlaneseq
        %v931 = vshrl.u32 %v930, 7
        %v932 = vsub.s32 %v437, %v931
        %v933 = vrot.slane %v809, %v932
        %v934 = vlaneseq
        %v935 = vshrl.u32 %v934, 7
        %v936 = vsub.s32 %v437, %v935
        %v937 = vrot.slane %v814, %v936
        %v938 = vlaneseq
        %v939 = vshrl.u32 %v938, 7
        %v940 = vsub.s32 %v437, %v939
        %v941 = vrot.slane %v819, %v940
        %v942 = vsel %vm495, %v917, %v913
        %v943 = vsel %vm497, %v921, %v942
        %v944 = vsel %vm499, %v925, %v943
        %v945 = vsel %vm501, %v929, %v944
        %v946 = vsel %vm503, %v933, %v945
        %v947 = vsel %vm505, %v937, %v946
        %v948 = vsel %vm507, %v941, %v947
        %950 = vst.msk [vmem:[%s365] sm:$0xff] %vm510, %v948
        %s951 = sand.u32 %s176, 1
        %s952 = scalar_lea.sflag [#allocation7], %s951
        %s953 = sand.u32 %s176, 1
        %s954 = smul.addr %s953, 8
        %s955 = scalar_lea.vmem [#allocation8], %s954
        %p956 = scmp.lt.s32.totalorder %s32, 1
        %s957 = scalar_select %p956, %s32, 1
        %s958 = smul.addr %s957, 8
        %s959 = scalar_lea.vmem %s7, %s958
        %s960 = sand.u32 %s228, 1
        %s961 = scalar_lea.sflag [#allocation10], %s960
        %s962 = sand.u32 %s228, 1
        %s963 = smul.addr %s962, 64
        %s964 = scalar_lea.vmem [#allocation9], %s963
        // Predicated region
        $region49: #{tpu_custom_call.1} parent=43 // pred_check
          %p965 = pneg %p186
        $region50: #{tpu_custom_call.1} parent=43 // pred_check_branch
          %967 = sbr.rel (%p965) target = $region52
        $region51: #{tpu_custom_call.1} parent=43 // pred_region
          %s969 = ssub.s32 128, 128
          %970 = vsyncadd %s952, %s969
          %s971 = smul.addr %s32, 128
          %s972 = scalar_lea.hbm %s6, %s971
          %s974 = sshll.u32 %s955, 4
          %s975 = int_to_ptr.vmem [resolvable:$true] %s974
          %977 = dma.vmem_to_hbm [thread:$0]  %s975, 128, %s972, %s952
        $region52: #{tpu_custom_call.1} parent=43 // pred_fallthru
          _
        // Predicated region
        $region53: #{tpu_custom_call.1} parent=43 // pred_check
          %p978 = pneg %p212
        $region54: #{tpu_custom_call.1} parent=43 // pred_check_branch
          %980 = sbr.rel (%p978) target = $region56
        $region55: #{tpu_custom_call.1} parent=43 // pred_region
          _
        $region56: #{tpu_custom_call.1} parent=43 // pred_fallthru
          _
        // Predicated region
        $region57: #{tpu_custom_call.1} parent=43 // pred_check
          %p981 = pneg %p238
        $region58: #{tpu_custom_call.1} parent=43 // pred_check_branch
          %983 = sbr.rel (%p981) target = $region60
        $region59: #{tpu_custom_call.1} parent=43 // pred_region
          %s984 = smul.u32 8, %s32
          %s986 = ssub.s32 1024, 1024
          %987 = vsyncadd %s961, %s986
          %s988 = smul.addr %s984, 128
          %s989 = scalar_lea.hbm %s8, %s988
          %s990 = sshll.u32 %s964, 4
          %s991 = int_to_ptr.vmem [resolvable:$true] %s990
          %996 = dma.vmem_to_hbm [thread:$0]  %s991, 1024, %s989, %s961, 128, 128, 8
        $region60: #{tpu_custom_call.1} parent=43 // pred_fallthru
          _
      $region44: #{tpu_custom_call.1} parent=5 // pred_fallthru
        _
      %p997 = scmp.le.s32.totalorder 2, %s27
      // Predicated region
      $region61: #{tpu_custom_call.1} parent=5 // pred_check
        %p998 = pneg %p997
      $region62: #{tpu_custom_call.1} parent=5 // pred_check_branch
        %1000 = sbr.rel (%p998) target = $region64
      $region63: #{tpu_custom_call.1} parent=5 // pred_region
        %s1001 = ssub.s32 %s27, 2
        // Predicated region
        $region65: #{tpu_custom_call.1} parent=63 // pred_check
          %p1002 = pneg %p192
        $region66: #{tpu_custom_call.1} parent=63 // pred_check_branch
          %1004 = sbr.rel (%p1002) target = $region68
        $region67: #{tpu_custom_call.1} parent=63 // pred_region
          %s1005 = sand.u32 %s177, 1
          %s1006 = scalar_lea.sflag [#allocation7], %s1005
          %s1007 = sand.u32 %s177, 1
          %s1008 = smul.addr %s1007, 8
          %s1009 = scalar_lea.vmem [#allocation8], %s1008
          %1010 = dma.done %s1006, 128
        $region68: #{tpu_custom_call.1} parent=63 // pred_fallthru
          _
        // Predicated region
        $region69: #{tpu_custom_call.1} parent=63 // pred_check
          %p1011 = pneg %p218
        $region70: #{tpu_custom_call.1} parent=63 // pred_check_branch
          %1013 = sbr.rel (%p1011) target = $region72
        $region71: #{tpu_custom_call.1} parent=63 // pred_region
          %p1014 = scmp.lt.s32.totalorder %s33, 1
          %s1015 = scalar_select %p1014, %s33, 1
          %s1016 = smul.addr %s1015, 8
          %s1017 = scalar_lea.vmem %s7, %s1016
        $region72: #{tpu_custom_call.1} parent=63 // pred_fallthru
          _
        // Predicated region
        $region73: #{tpu_custom_call.1} parent=63 // pred_check
          %p1018 = pneg %p244
        $region74: #{tpu_custom_call.1} parent=63 // pred_check_branch
          %1020 = sbr.rel (%p1018) target = $region76
        $region75: #{tpu_custom_call.1} parent=63 // pred_region
          %s1021 = sand.u32 %s229, 1
          %s1022 = scalar_lea.sflag [#allocation10], %s1021
          %s1023 = sand.u32 %s229, 1
          %s1024 = smul.addr %s1023, 64
          %s1025 = scalar_lea.vmem [#allocation9], %s1024
          %1026 = dma.done %s1022, 1024
        $region76: #{tpu_custom_call.1} parent=63 // pred_fallthru
          _
      $region64: #{tpu_custom_call.1} parent=5 // pred_fallthru
        _
    $region6: #{tpu_custom_call.1} parent=1 // loop_footer
      %s31 = sadd.s32 1, %s27
    $region7: #{tpu_custom_call.1} parent=1 // loop_footer_branch
      %26 = sbr.rel target = $region3
    $region8: #{tpu_custom_call.1} parent=1 // loop_exit
      _
    %1027 = vsyncpa [#allocation6], 1
    %s1028 = scalar_lea.sflag [#allocation6], 1
    %1029 = vsyncpa %s1028, 1
    %1030 = vsyncpa [#allocation7], 1
    %s1031 = scalar_lea.sflag [#allocation7], 1
    %1032 = vsyncpa %s1031, 1
    %1033 = vsyncpa [#allocation10], 1
    %s1034 = scalar_lea.sflag [#allocation10], 1
    %1035 = vsyncpa %s1034, 1

</llo_original>
